<compile_context>
chip_gen: v6e
topology: v6e:2x2x1
jax: 0.10.0
libtpu: 0.0.40
codegen_flags: <defaults>
</compile_context>

<pallas_src>
import jax
import jax.numpy as jnp
from jax.experimental import pallas as pl
from jax.experimental.pallas import tpu as pltpu


def _round_up(n: int, m: int) -> int:
    return ((n + m - 1) // m) * m


def _mlp_kernel(x_ref, w1_ref, b1_ref, w2_ref, b2_ref, o_ref):
    # Layer 1: (TB, D) @ (D, Hp) on the MXU (bf16 operands, f32 accumulate);
    # bias add + ReLU stay in f32 on the VPU (also fine on v5e, no bf16 VPU).
    x = x_ref[...].astype(w1_ref.dtype)          # in-kernel f32 -> bf16 cast
    h = jnp.dot(x, w1_ref[...], preferred_element_type=jnp.float32)
    h = jnp.maximum(h + b1_ref[...], 0.0)
    # Layer 2: (TB, Hp) @ (Hp, D), f32 accumulate, bias add in f32.
    # TODO(synk): keep h in f32 here if downstream flow numerics require it.
    y = jnp.dot(h.astype(w2_ref.dtype), w2_ref[...],
                preferred_element_type=jnp.float32)
    o_ref[...] = (y + b2_ref[...]).astype(o_ref.dtype)


def basic_scale_net(x, w1, b1, w2, b2, *, block_b=2048,
                    compute_dtype=jnp.bfloat16):
    """x: (B, D); w1: (D, H); b1: (H,); w2: (H, D); b2: (D,). Returns (B, D)."""
    B, D = x.shape
    H = w1.shape[1]
    out_dtype = x.dtype

    LANE = 128
    SUB = 16                        # bf16 sublane packing (16, 128)
    H_pad = _round_up(H, LANE)      # lane-dense hidden dim (exact zero pad)

    # Batch tiling: honor block_b, keep >= 2 tiles for v7x megacore when the
    # batch is big enough to split, and bound padding waste to < one tile by
    # sizing TB ~= ceil(B / n_tiles) rounded to the bf16 sublane packing.
    min_tiles = 2 if B >= 4 * SUB else 1
    n_tiles = max(pl.cdiv(B, block_b), min_tiles)
    TB = _round_up(pl.cdiv(B, n_tiles), SUB)
    B_pad = _round_up(B, TB)
    grid = (pl.cdiv(B_pad, TB),)

    # Only the small, bounded batch remainder gets padded; x keeps its dtype
    # and feature width (BlockSpec last dim == full array dim is legal).
    xp = x if B_pad == B else jnp.pad(x, ((0, B_pad - B), (0, 0)))

    # Weights / biases: tiny, DMA'd once, padded to lane-dense H (exact:
    # padded W1 columns / W2 rows and padded b1 entries contribute 0).
    w1p = jnp.pad(w1, ((0, 0), (0, H_pad - H))).astype(compute_dtype)
    w2p = jnp.pad(w2, ((0, H_pad - H), (0, 0))).astype(compute_dtype)
    b1p = jnp.pad(b1, (0, H_pad - H)).reshape(1, H_pad).astype(jnp.float32)
    b2p = b2.reshape(1, D).astype(jnp.float32)

    out = pl.pallas_call(
        _mlp_kernel,
        out_shape=jax.ShapeDtypeStruct((B_pad, D), out_dtype),
        grid_spec=pltpu.PrefetchScalarGridSpec(
            num_scalar_prefetch=0,
            grid=grid,
            in_specs=[
                pl.BlockSpec((TB, D), lambda i: (i, 0)),       # x: batch-tiled
                pl.BlockSpec((D, H_pad), lambda i: (0, 0)),    # W1: resident
                pl.BlockSpec((1, H_pad), lambda i: (0, 0)),    # b1: resident
                pl.BlockSpec((H_pad, D), lambda i: (0, 0)),    # W2: resident
                pl.BlockSpec((1, D), lambda i: (0, 0)),        # b2: resident
            ],
            out_specs=pl.BlockSpec((TB, D), lambda i: (i, 0)),
        ),
        compiler_params=pltpu.CompilerParams(
            # Batch tiles are independent -> megacore sharding on v7x.
            dimension_semantics=("parallel",),
        ),
    )(xp, w1p, b1p, w2p, b2p)

    return out if B_pad == B else out[:B]


def _init_params(key, D, H, dtype=jnp.float32):
    """Deterministic PyTorch-style init: U(-1/sqrt(fan_in), 1/sqrt(fan_in))."""
    k1, k2, k3, k4 = jax.random.split(key, 4)
    bound1 = 1.0 / jnp.sqrt(D)
    bound2 = 1.0 / jnp.sqrt(H)
    # Stored transposed relative to torch's (out, in) so the kernel uses x @ W.
    w1 = jax.random.uniform(k1, (D, H), dtype, -bound1, bound1)
    b1 = jax.random.uniform(k2, (H,), dtype, -bound1, bound1)
    w2 = jax.random.uniform(k3, (H, D), dtype, -bound2, bound2)
    b2 = jax.random.uniform(k4, (D,), dtype, -bound2, bound2)
    return w1, b1, w2, b2


if __name__ == "__main__":
    B, D, H = 8, 16, 32  # batch, input/output dim D, num_hidden

    key = jax.random.PRNGKey(0)
    kx, kp = jax.random.split(key)
    x = jax.random.normal(kx, (B, D), jnp.float32)
    w1, b1, w2, b2 = _init_params(kp, D, H)

    y = basic_scale_net(x, w1, b1, w2, b2)
    y = jax.block_until_ready(y)

    # Pure-JAX f32 reference of the same math.
    ref = jnp.maximum(x @ w1 + b1, 0.0) @ w2 + b2
    assert y.shape == (B, D)
    # bf16 MXU operands -> bf16-level tolerance vs. the f32 reference.
    assert jnp.allclose(y, ref, atol=3e-2, rtol=3e-2), float(
        jnp.max(jnp.abs(y - ref)))

    print("KERNEL_OK")
</pallas_src>

<mosaic_0001>
module attributes {stable_mosaic.version = 11 : i64} {
  func.func @_mlp_kernel(%arg0: i32, %arg1: memref<16x16xf32, #tpu.memory_space<vmem>>, %arg2: memref<16x128xbf16, #tpu.memory_space<vmem>>, %arg3: memref<1x128xf32, #tpu.memory_space<vmem>>, %arg4: memref<128x16xbf16, #tpu.memory_space<vmem>>, %arg5: memref<1x16xf32, #tpu.memory_space<vmem>>, %arg6: memref<16x16xf32, #tpu.memory_space<vmem>>) attributes {dimension_semantics = [#tpu.dimension_semantics<parallel>], iteration_bounds = array<i64: 1>, scalar_prefetch = 0 : i64, scratch_operands = 0 : i64, tpu.core_type = #tpu.core_type<tc>, window_params = [{transform_indices = @transform_0, window_bounds = array<i64: 16, 16>}, {pipeline_mode = #tpu.pipeline_mode<synchronous>, transform_indices = @transform_1, window_bounds = array<i64: 16, 128>}, {pipeline_mode = #tpu.pipeline_mode<synchronous>, transform_indices = @transform_2, window_bounds = array<i64: 1, 128>}, {pipeline_mode = #tpu.pipeline_mode<synchronous>, transform_indices = @transform_3, window_bounds = array<i64: 128, 16>}, {pipeline_mode = #tpu.pipeline_mode<synchronous>, transform_indices = @transform_4, window_bounds = array<i64: 1, 16>}, {transform_indices = @transform_5, window_bounds = array<i64: 16, 16>}]} {
    %c0 = arith.constant 0 : index
    %c0_0 = arith.constant 0 : index
    %0 = vector.load %arg1[%c0, %c0_0] : memref<16x16xf32, #tpu.memory_space<vmem>>, vector<16x16xf32>
    %1 = arith.truncf %0 : vector<16x16xf32> to vector<16x16xbf16>
    %c0_1 = arith.constant 0 : index
    %c0_2 = arith.constant 0 : index
    %2 = vector.load %arg2[%c0_1, %c0_2] : memref<16x128xbf16, #tpu.memory_space<vmem>>, vector<16x128xbf16>
    %cst = arith.constant dense<0.000000e+00> : vector<16x128xf32>
    %3 = tpu.matmul %1, %2, %cst {dimension_numbers = #tpu.dot_dimension_numbers<[1], [0], [0], [1], [0, 0, 1, 1], [], []>} : vector<16x16xbf16>, vector<16x128xbf16>, vector<16x128xf32> -> vector<16x128xf32>
    %c0_3 = arith.constant 0 : index
    %c0_4 = arith.constant 0 : index
    %4 = vector.load %arg3[%c0_3, %c0_4] : memref<1x128xf32, #tpu.memory_space<vmem>>, vector<1x128xf32>
    %5 = vector.broadcast %4 : vector<1x128xf32> to vector<16x128xf32>
    %6 = arith.addf %3, %5 : vector<16x128xf32>
    %cst_5 = arith.constant 0.000000e+00 : f32
    %7 = vector.broadcast %cst_5 : f32 to vector<16x128xf32>
    %8 = arith.maximumf %6, %7 : vector<16x128xf32>
    %9 = arith.truncf %8 : vector<16x128xf32> to vector<16x128xbf16>
    %c0_6 = arith.constant 0 : index
    %c0_7 = arith.constant 0 : index
    %10 = vector.load %arg4[%c0_6, %c0_7] : memref<128x16xbf16, #tpu.memory_space<vmem>>, vector<128x16xbf16>
    %cst_8 = arith.constant dense<0.000000e+00> : vector<16x16xf32>
    %11 = tpu.matmul %9, %10, %cst_8 {dimension_numbers = #tpu.dot_dimension_numbers<[1], [0], [0], [1], [0, 0, 1, 1], [], []>} : vector<16x128xbf16>, vector<128x16xbf16>, vector<16x16xf32> -> vector<16x16xf32>
    %c0_9 = arith.constant 0 : index
    %c0_10 = arith.constant 0 : index
    %12 = vector.load %arg5[%c0_9, %c0_10] : memref<1x16xf32, #tpu.memory_space<vmem>>, vector<1x16xf32>
    %13 = vector.broadcast %12 : vector<1x16xf32> to vector<16x16xf32>
    %14 = arith.addf %11, %13 : vector<16x16xf32>
    %c0_11 = arith.constant 0 : index
    %c0_12 = arith.constant 0 : index
    %15 = vector.load %arg6[%c0_11, %c0_12] : memref<16x16xf32, #tpu.memory_space<vmem>>, vector<16x16xf32>
    tpu.vector_store %arg6[%c0_11, %c0_12], %14 {strides = array<i32>} : memref<16x16xf32, #tpu.memory_space<vmem>>, vector<16x16xf32>,
    return
  }
  func.func @transform_0(%arg0: i32) -> (i32, i32) {
    %c0_i32 = arith.constant 0 : i32
    %c0_i32_0 = arith.constant 0 : i32
    return %arg0, %c0_i32 : i32, i32
  }
  func.func @transform_1(%arg0: i32) -> (i32, i32) {
    %c0_i32 = arith.constant 0 : i32
    %c0_i32_0 = arith.constant 0 : i32
    %c0_i32_1 = arith.constant 0 : i32
    return %c0_i32, %c0_i32_0 : i32, i32
  }
  func.func @transform_2(%arg0: i32) -> (i32, i32) {
    %c0_i32 = arith.constant 0 : i32
    %c0_i32_0 = arith.constant 0 : i32
    %c0_i32_1 = arith.constant 0 : i32
    return %c0_i32, %c0_i32_0 : i32, i32
  }
  func.func @transform_3(%arg0: i32) -> (i32, i32) {
    %c0_i32 = arith.constant 0 : i32
    %c0_i32_0 = arith.constant 0 : i32
    %c0_i32_1 = arith.constant 0 : i32
    return %c0_i32, %c0_i32_0 : i32, i32
  }
  func.func @transform_4(%arg0: i32) -> (i32, i32) {
    %c0_i32 = arith.constant 0 : i32
    %c0_i32_0 = arith.constant 0 : i32
    %c0_i32_1 = arith.constant 0 : i32
    return %c0_i32, %c0_i32_0 : i32, i32
  }
  func.func @transform_5(%arg0: i32) -> (i32, i32) {
    %c0_i32 = arith.constant 0 : i32
    %c0_i32_0 = arith.constant 0 : i32
    return %arg0, %c0_i32 : i32, i32
  }
}

</mosaic_0001>

<llo_original>
// kernel: tpu_custom_call.1
$region0: #{tpu_custom_call.1}
  #allocation0 [shape = 'u32[]', space=smem, size = 0x4, offset = 0x4, fixed_abs, tag = 'smem constant byte address 0x4 - core index']
  #allocation1 [shape = 'u32[144,128]{1,0:T(1,128)}', space=vmem, size = 0x12000, scoped, tag = 'internal scratch']
  %s0 = inlined_call_operand.vmem [shape: f32[16,16], index: 0, kind: input, shape index: {}]
  %s1 = inlined_call_operand.vmem [shape: bf16[16,128], index: 1, kind: input, shape index: {}]
  %s2 = inlined_call_operand.vmem [shape: f32[1,128], index: 2, kind: input, shape index: {}]
  %s3 = inlined_call_operand.vmem [shape: bf16[128,16], index: 3, kind: input, shape index: {}]
  %s4 = inlined_call_operand.vmem [shape: f32[1,16], index: 4, kind: input, shape index: {}]
  %s5 = inlined_call_operand.hbm [shape: f32[16,16], index: 5, kind: output, shape index: {}]
  %s6 = sld [smem:[#allocation0]]
  $region30: #{tpu_custom_call.1} parent=0
    _
  %s8 = ssub.s32 1, %s6
  %s9 = scalar_select 0, %s8, %s6
  $region1: #{tpu_custom_call.1} parent=0
    #allocation2 [shape = 'u8[8192]{0}', space=vmem, size = 0x2000, scoped, tag = 'output window, operand 0, single buffered']
    #allocation3 [shape = 's32[1]{0}', space=sflag, size = 0x4, scoped, tag = 'scoped memory for tpu_custom_call.1']
    %10 = vsyncpa [#allocation3], 0
    // Predicated region
    $region2: #{tpu_custom_call.1} parent=1 // pred_check
      _
    $region3: #{tpu_custom_call.1} parent=1 // pred_check_branch
      %12 = sbr.rel (0) target = $region5
    $region4: #{tpu_custom_call.1} parent=1 // pred_region
      _
    $region5: #{tpu_custom_call.1} parent=1 // pred_fallthru
      _
    // Predicated region
    $region6: #{tpu_custom_call.1} parent=1 // pred_check
      _
    $region7: #{tpu_custom_call.1} parent=1 // pred_check_branch
      %14 = sbr.rel (0) target = $region9
    $region8: #{tpu_custom_call.1} parent=1 // pred_region
      _
    $region9: #{tpu_custom_call.1} parent=1 // pred_fallthru
      _
    // Predicated region
    $region10: #{tpu_custom_call.1} parent=1 // pred_check
      _
    $region11: #{tpu_custom_call.1} parent=1 // pred_check_branch
      %16 = sbr.rel (0) target = $region13
    $region12: #{tpu_custom_call.1} parent=1 // pred_region
      _
    $region13: #{tpu_custom_call.1} parent=1 // pred_fallthru
      _
    // Predicated region
    $region14: #{tpu_custom_call.1} parent=1 // pred_check
      _
    $region15: #{tpu_custom_call.1} parent=1 // pred_check_branch
      %18 = sbr.rel (0) target = $region17
    $region16: #{tpu_custom_call.1} parent=1 // pred_region
      _
    $region17: #{tpu_custom_call.1} parent=1 // pred_fallthru
      _
    // Predicated region
    $region18: #{tpu_custom_call.1} parent=1 // pred_check
      _
    $region19: #{tpu_custom_call.1} parent=1 // pred_check_branch
      %20 = sbr.rel (0) target = $region21
    $region20: #{tpu_custom_call.1} parent=1 // pred_region
      _
    $region21: #{tpu_custom_call.1} parent=1 // pred_fallthru
      _
    %v22 = vld [vmem:[%s0] sm:$0xff]
    %v23 = vld [vmem:[%s0 + $0x8] sm:$0xff]
    %v24 = vpack.c.bf16 %v23, %v22
    %v25 = vld [vmem:[%s1] sm:$0xf]
    %v26 = vld [vmem:[%s1 + $0x4] sm:$0xf]
    %v27 = vld [vmem:[%s2] sm:$0x1]
    %v29 = vlaneseq
    %v30 = vshrl.u32 %v29, 7
    %v31 = vsub.s32 0, %v30
    %v32 = vrot.slane %v27, %v31
    %v36 = vunpack.c.l.b16 %v25
    %v37 = vunpack.c.l.b16 %v26
    %v38 = vpack.c.b16 %v37, %v36
    %vm40 = vcmask 130048
    %v42 = vsel %vm40, %v24, 0
    %44 = vmatprep.subr.bf16.mxu0 0
    %45 = vmatpush1.bf16.msra.mxu0 0
    %46 = vmatprep.subr.bf16.mxu0 0
    %47 = vmatpush1.bf16.msra.mxu0 0
    %48 = vmatprep.subr.bf16.mxu0 0
    %49 = vmatpush1.bf16.msra.mxu0 0
    %50 = vmatprep.subr.bf16.mxu0 0
    %51 = vmatpush1.bf16.msra.mxu0 0
    %52 = vmatprep.subr.bf16.mxu0 0
    %53 = vmatpush1.bf16.msra.mxu0 0
    %54 = vmatprep.subr.bf16.mxu0 0
    %55 = vmatpush1.bf16.msra.mxu0 0
    %56 = vmatprep.subr.bf16.mxu0 0
    %57 = vmatpush1.bf16.msra.mxu0 0
    %58 = vmatprep.subr.bf16.mxu0 0
    %59 = vmatpush1.bf16.msra.mxu0 %v38
    %60 = vmatprep.subr.bf16.mxu0 0
    %61 = vmatpush2.bf16.msra.mxu0 0
    %62 = vmatprep.subr.bf16.mxu0 0
    %63 = vmatpush2.bf16.msra.mxu0 0
    %64 = vmatprep.subr.bf16.mxu0 0
    %65 = vmatpush2.bf16.msra.mxu0 0
    %66 = vmatprep.subr.bf16.mxu0 0
    %67 = vmatpush2.bf16.msra.mxu0 0
    %68 = vmatprep.subr.bf16.mxu0 0
    %69 = vmatpush2.bf16.msra.mxu0 0
    %70 = vmatprep.subr.bf16.mxu0 0
    %71 = vmatpush2.bf16.msra.mxu0 0
    %72 = vmatprep.subr.bf16.mxu0 0
    %73 = vmatpush2.bf16.msra.mxu0 0
    %74 = vmatprep.subr.bf16.mxu0 0
    %75 = vmatpush2.bf16.msra.mxu0 0
    %76 = vmatprep.mubr.bf16.mxu0 0
    %77 = vmatmul.mubr.bf16.gmra.mxu0 %v42
    %v78 = vpop.f32.mrf.mxu0
    %v79 = vadd.f32 %v32, %v78
    %v80 = vpop.f32.mrf.mxu0
    %v81 = vpop.f32.mrf.mxu0
    %v82 = vadd.f32 %v32, %v81
    %v83 = vpop.f32.mrf.mxu0
    %84 = vdwg.mxu0
    %v85 = vmax.f32 %v79, 0.0
    %v86 = vmax.f32 %v82, 0.0
    %v87 = vpack.c.bf16 %v86, %v85
    %v88 = vld [vmem:[%s3] sm:$0xf]
    %v89 = vld [vmem:[%s3 + $0x4] sm:$0xf]
    %v90 = vld [vmem:[%s3 + $0x8] sm:$0xf]
    %v91 = vld [vmem:[%s3 + $0xc] sm:$0xf]
    %v92 = vld [vmem:[%s3 + $0x10] sm:$0xf]
    %v93 = vld [vmem:[%s3 + $0x14] sm:$0xf]
    %v94 = vld [vmem:[%s3 + $0x18] sm:$0xf]
    %v95 = vld [vmem:[%s3 + $0x1c] sm:$0xf]
    %v96 = vld [vmem:[%s3 + $0x20] sm:$0xf]
    %v97 = vld [vmem:[%s3 + $0x24] sm:$0xf]
    %v98 = vld [vmem:[%s3 + $0x28] sm:$0xf]
    %v99 = vld [vmem:[%s3 + $0x2c] sm:$0xf]
    %v100 = vld [vmem:[%s3 + $0x30] sm:$0xf]
    %v101 = vld [vmem:[%s3 + $0x34] sm:$0xf]
    %v102 = vld [vmem:[%s3 + $0x38] sm:$0xf]
    %v103 = vld [vmem:[%s3 + $0x3c] sm:$0xf]
    %v104 = vld [vmem:[%s4] sm:$0x1]
    %v106 = vlaneseq
    %v107 = vshrl.u32 %v106, 7
    %v108 = vsub.s32 0, %v107
    %v109 = vrot.slane %v104, %v108
    %v127 = vunpack.c.l.b16 %v88
    %v128 = vunpack.c.l.b16 %v89
    %v129 = vunpack.c.l.b16 %v90
    %v130 = vunpack.c.l.b16 %v91
    %v131 = vunpack.c.l.b16 %v92
    %v132 = vunpack.c.l.b16 %v93
    %v133 = vunpack.c.l.b16 %v94
    %v134 = vunpack.c.l.b16 %v95
    %v135 = vunpack.c.l.b16 %v96
    %v136 = vunpack.c.l.b16 %v97
    %v137 = vunpack.c.l.b16 %v98
    %v138 = vunpack.c.l.b16 %v99
    %v139 = vunpack.c.l.b16 %v100
    %v140 = vunpack.c.l.b16 %v101
    %v141 = vunpack.c.l.b16 %v102
    %v142 = vunpack.c.l.b16 %v103
    %v143 = vpack.c.b16 %v128, %v127
    %v144 = vpack.c.b16 %v130, %v129
    %v145 = vpack.c.b16 %v132, %v131
    %v146 = vpack.c.b16 %v134, %v133
    %v147 = vpack.c.b16 %v136, %v135
    %v148 = vpack.c.b16 %v138, %v137
    %v149 = vpack.c.b16 %v140, %v139
    %v150 = vpack.c.b16 %v142, %v141
    %159 = vmatprep.subr.bf16.mxu0 0
    %160 = vmatpush1.bf16.msra.mxu0 %v150
    %161 = vmatprep.subr.bf16.mxu0 0
    %162 = vmatpush1.bf16.msra.mxu0 %v149
    %163 = vmatprep.subr.bf16.mxu0 0
    %164 = vmatpush1.bf16.msra.mxu0 %v148
    %165 = vmatprep.subr.bf16.mxu0 0
    %166 = vmatpush1.bf16.msra.mxu0 %v147
    %167 = vmatprep.subr.bf16.mxu0 0
    %168 = vmatpush1.bf16.msra.mxu0 %v146
    %169 = vmatprep.subr.bf16.mxu0 0
    %170 = vmatpush1.bf16.msra.mxu0 %v145
    %171 = vmatprep.subr.bf16.mxu0 0
    %172 = vmatpush1.bf16.msra.mxu0 %v144
    %173 = vmatprep.subr.bf16.mxu0 0
    %174 = vmatpush1.bf16.msra.mxu0 %v143
    %175 = vmatprep.subr.bf16.mxu0 0
    %176 = vmatpush2.bf16.msra.mxu0 0
    %177 = vmatprep.subr.bf16.mxu0 0
    %178 = vmatpush2.bf16.msra.mxu0 0
    %179 = vmatprep.subr.bf16.mxu0 0
    %180 = vmatpush2.bf16.msra.mxu0 0
    %181 = vmatprep.subr.bf16.mxu0 0
    %182 = vmatpush2.bf16.msra.mxu0 0
    %183 = vmatprep.subr.bf16.mxu0 0
    %184 = vmatpush2.bf16.msra.mxu0 0
    %185 = vmatprep.subr.bf16.mxu0 0
    %186 = vmatpush2.bf16.msra.mxu0 0
    %187 = vmatprep.subr.bf16.mxu0 0
    %188 = vmatpush2.bf16.msra.mxu0 0
    %189 = vmatprep.subr.bf16.mxu0 0
    %190 = vmatpush2.bf16.msra.mxu0 0
    %191 = vmatprep.mubr.bf16.mxu0 0
    %192 = vmatmul.mubr.bf16.gmra.mxu0 %v87
    %v193 = vpop.f32.mrf.mxu0
    %v194 = vadd.f32 %v109, %v193
    %v195 = vpop.f32.mrf.mxu0
    %v196 = vpop.f32.mrf.mxu0
    %v197 = vadd.f32 %v109, %v196
    %v198 = vpop.f32.mrf.mxu0
    %199 = vdwg.mxu0
    %200 = vst.msk [vmem:[#allocation2] sm:$0xff] %vm40, %v194
    %201 = vst.msk [vmem:[#allocation2 + $0x8] sm:$0xff] %vm40, %v197
    // Predicated region
    $region22: #{tpu_custom_call.1} parent=1 // pred_check
      _
    $region23: #{tpu_custom_call.1} parent=1 // pred_check_branch
      %203 = sbr.rel (0) target = $region25
    $region24: #{tpu_custom_call.1} parent=1 // pred_region
      %s205 = ssub.s32 256, 256
      %206 = vsyncadd [#allocation3], %s205
      %s207 = sshll.u32 [#allocation2], 4
      %s208 = int_to_ptr.vmem [resolvable:$true] %s207
      %213 = dma.vmem_to_hbm [thread:$0]  %s208, 256, %s5, [#allocation3], 128, 128, 8
    $region25: #{tpu_custom_call.1} parent=1 // pred_fallthru
      _
    // Predicated region
    $region26: #{tpu_custom_call.1} parent=1 // pred_check
      _
    $region27: #{tpu_custom_call.1} parent=1 // pred_check_branch
      %215 = sbr.rel (0) target = $region29
    $region28: #{tpu_custom_call.1} parent=1 // pred_region
      %216 = dma.done [#allocation3], 256
    $region29: #{tpu_custom_call.1} parent=1 // pred_fallthru
      _
    %217 = vsyncpa [#allocation3], 1

</llo_original>
